<compile_context>
chip_gen: v7x
topology: tpu7x:2x2x1
jax: 0.10.0
libtpu: 0.0.40
codegen_flags: <defaults>
</compile_context>

<pallas_src>
import jax
import jax.numpy as jnp
from jax.experimental import pallas as pl
from jax.experimental.pallas import tpu as pltpu


def ffnn_kernel(x_ref, w1_ref, b1_ref, w2_ref, b2_ref, out_ref):
    # x_ref:  (TB, D)        VMEM, streamed per grid step (bf16 or f32)
    # w1_ref: (D, H)         VMEM, resident (same dtype as x)
    # b1_ref: (1, H)  f32    VMEM, resident
    # w2_ref: (1, H)  f32    VMEM, resident (layer-2 weight as a row)
    # b2_ref: (1, 1)  f32    SMEM scalar
    # out_ref:(TB//128, 128) VMEM, tile-aligned lane-dense output slab
    x = x_ref[...]

    # Layer 1: MXU matmul with f32 accumulation, then bias + sigmoid (VPU/EUP).
    z1 = jnp.dot(x, w1_ref[...], preferred_element_type=jnp.float32)
    a1 = jax.nn.sigmoid(z1 + b1_ref[...])                       # (TB, H) f32

    # Layer 2: H -> 1 as VPU multiply + lane reduction (skip 1-column MXU op).
    z2 = jnp.sum(a1 * w2_ref[...], axis=-1) + b2_ref[0, 0]      # (TB,)
    a2 = jax.nn.sigmoid(z2)

    # Tile-aligned store: batch rows map row-major onto the (TB//128,128) slab.
    out_ref[...] = a2.reshape(out_ref.shape).astype(out_ref.dtype)


def feed_forward_nn(x, w1, b1, w2, b2, *, max_tile=8192,
                    stream_dtype=jnp.bfloat16):
    """x: (B, D); w1: (D, H); b1: (1, H); w2: (H, 1); b2: (1, 1).

    Returns (B, 1) f32, matching sigmoid(sigmoid(x@w1+b1)@w2+b2).
    stream_dtype: dtype used to stream x / hold w1 (bf16 default, f32 exact).
    """
    B, D = x.shape
    H = w1.shape[1]

    # Tile size: multiple of 1024 rows when tiling (keeps the output block's
    # second-minor dim a multiple of 8), capped at max_tile.
    max_tile = max(1024, (max_tile // 1024) * 1024)
    B128 = ((B + 127) // 128) * 128
    if B128 <= max_tile:
        TB = B128                     # single step; blocks == full arrays
    else:
        TB = max_tile                 # G >= 2 -> v7x megacore gets both tiles
    Bp = ((B128 + TB - 1) // TB) * TB
    G = Bp // TB
    RB = TB // 128                    # output-slab rows per grid step

    if Bp != B:
        x = jnp.pad(x, ((0, Bp - B), (0, 0)))

    x_s = x.astype(stream_dtype)
    w1_s = w1.astype(stream_dtype)
    b1_f = b1.reshape(1, H).astype(jnp.float32)
    w2_row = w2.reshape(1, H).astype(jnp.float32)   # (H,1) -> (1,H)
    b2_s = b2.reshape(1, 1).astype(jnp.float32)

    itemsize = jnp.dtype(stream_dtype).itemsize

    out_slab = pl.pallas_call(
        ffnn_kernel,
        out_shape=jax.ShapeDtypeStruct((Bp // 128, 128), jnp.float32),
        grid=(G,),
        in_specs=[
            pl.BlockSpec((TB, D), lambda i: (i, 0)),                 # x: streamed
            pl.BlockSpec((D, H), lambda i: (0, 0)),                  # w1: resident
            pl.BlockSpec((1, H), lambda i: (0, 0)),                  # b1: resident
            pl.BlockSpec((1, H), lambda i: (0, 0)),                  # w2 row: resident
            pl.BlockSpec((1, 1), lambda i: (0, 0),
                         memory_space=pltpu.SMEM),                   # b2 scalar
        ],
        out_specs=pl.BlockSpec((RB, 128), lambda i: (i, 0)),         # tile-aligned out
        compiler_params=pltpu.CompilerParams(
            dimension_semantics=("parallel",),
        ),
        cost_estimate=pl.CostEstimate(
            flops=2 * Bp * D * H + 2 * Bp * H,
            transcendentals=Bp * (H + 1),
            bytes_accessed=(itemsize * (Bp * D + D * H)
                            + 4 * (H + H + 1 + Bp)),
        ),
    )(x_s, w1_s, b1_f, w2_row, b2_s)

    # Row-major flatten of the (Bp//128, 128) slab recovers batch order.
    return out_slab.reshape(Bp, 1)[:B]


def reference(x, w1, b1, w2, b2):
    a1 = jax.nn.sigmoid(x @ w1 + b1)
    return jax.nn.sigmoid(a1 @ w2 + b2)


if __name__ == "__main__":
    key = jax.random.PRNGKey(0)
    dims = 32      # input feature dimension (nn.Linear(dims, 20))
    batch = 8
    hidden = 20
    out_dim = 1

    k_x, k_w1, k_b1, k_w2, k_b2 = jax.random.split(key, 5)

    bound1 = 1.0 / (dims ** 0.5)
    bound2 = 1.0 / (hidden ** 0.5)
    x = jax.random.normal(k_x, (batch, dims), dtype=jnp.float32)
    w1 = jax.random.uniform(k_w1, (dims, hidden), jnp.float32, -bound1, bound1)
    b1 = jax.random.uniform(k_b1, (1, hidden), jnp.float32, -bound1, bound1)
    w2 = jax.random.uniform(k_w2, (hidden, out_dim), jnp.float32, -bound2, bound2)
    b2 = jax.random.uniform(k_b2, (1, out_dim), jnp.float32, -bound2, bound2)

    ref = reference(x, w1, b1, w2, b2)

    # 1) Exact f32 streaming path (single-tile grid).
    out_f32 = jax.block_until_ready(
        feed_forward_nn(x, w1, b1, w2, b2, stream_dtype=jnp.float32))
    assert out_f32.shape == (batch, out_dim)
    assert jnp.allclose(out_f32, ref, atol=1e-5, rtol=1e-5)

    # 2) Default bf16 streaming path (looser tolerance vs the f32 reference).
    out_bf16 = jax.block_until_ready(feed_forward_nn(x, w1, b1, w2, b2))
    assert out_bf16.shape == (batch, out_dim)
    assert jnp.allclose(out_bf16, ref, atol=2e-2, rtol=2e-2)

    # 3) Multi-tile grid path (G >= 2, padded batch) with exact f32 streaming.
    batch_big = 2304
    x_big = jax.random.normal(jax.random.PRNGKey(1), (batch_big, dims),
                              dtype=jnp.float32)
    out_big = jax.block_until_ready(
        feed_forward_nn(x_big, w1, b1, w2, b2,
                        max_tile=2048, stream_dtype=jnp.float32))
    ref_big = reference(x_big, w1, b1, w2, b2)
    assert out_big.shape == (batch_big, out_dim)
    assert jnp.allclose(out_big, ref_big, atol=1e-5, rtol=1e-5)

    print("KERNEL_OK")
</pallas_src>

<mosaic_0001>
module attributes {stable_mosaic.version = 11 : i64} {
  func.func @ffnn_kernel(%arg0: i32, %arg1: memref<128x32xf32, #tpu.memory_space<vmem>>, %arg2: memref<32x20xf32, #tpu.memory_space<vmem>>, %arg3: memref<1x20xf32, #tpu.memory_space<vmem>>, %arg4: memref<1x20xf32, #tpu.memory_space<vmem>>, %arg5: memref<1x1xf32, #tpu.memory_space<smem>>, %arg6: memref<1x128xf32, #tpu.memory_space<vmem>>) attributes {dimension_semantics = [#tpu.dimension_semantics<parallel>], iteration_bounds = array<i64: 1>, scalar_prefetch = 0 : i64, scratch_operands = 0 : i64, tpu.core_type = #tpu.core_type<tc>, window_params = [{transform_indices = @transform_0, window_bounds = array<i64: 128, 32>}, {pipeline_mode = #tpu.pipeline_mode<synchronous>, transform_indices = @transform_1, window_bounds = array<i64: 32, 20>}, {pipeline_mode = #tpu.pipeline_mode<synchronous>, transform_indices = @transform_2, window_bounds = array<i64: 1, 20>}, {pipeline_mode = #tpu.pipeline_mode<synchronous>, transform_indices = @transform_3, window_bounds = array<i64: 1, 20>}, {transform_indices = @transform_4, window_bounds = array<i64: 1, 1>}, {transform_indices = @transform_5, window_bounds = array<i64: 1, 128>}]} {
    %c0 = arith.constant 0 : index
    %c0_0 = arith.constant 0 : index
    %0 = vector.load %arg1[%c0, %c0_0] : memref<128x32xf32, #tpu.memory_space<vmem>>, vector<128x32xf32>
    %c0_1 = arith.constant 0 : index
    %c0_2 = arith.constant 0 : index
    %1 = vector.load %arg2[%c0_1, %c0_2] : memref<32x20xf32, #tpu.memory_space<vmem>>, vector<32x20xf32>
    %cst = arith.constant dense<0.000000e+00> : vector<128x20xf32>
    %2 = tpu.matmul %0, %1, %cst {dimension_numbers = #tpu.dot_dimension_numbers<[1], [0], [0], [1], [0, 0, 1, 1], [], []>} : vector<128x32xf32>, vector<32x20xf32>, vector<128x20xf32> -> vector<128x20xf32>
    %c0_3 = arith.constant 0 : index
    %c0_4 = arith.constant 0 : index
    %3 = vector.load %arg3[%c0_3, %c0_4] : memref<1x20xf32, #tpu.memory_space<vmem>>, vector<1x20xf32>
    %4 = vector.broadcast %3 : vector<1x20xf32> to vector<128x20xf32>
    %5 = arith.addf %2, %4 : vector<128x20xf32>
    %6 = arith.negf %5 : vector<128x20xf32>
    %7 = math.exp %6 : vector<128x20xf32>
    %cst_5 = arith.constant 1.000000e+00 : f32
    %8 = vector.broadcast %cst_5 : f32 to vector<128x20xf32>
    %9 = arith.addf %8, %7 : vector<128x20xf32>
    %10 = arith.divf %8, %9 : vector<128x20xf32>
    %c0_6 = arith.constant 0 : index
    %c0_7 = arith.constant 0 : index
    %11 = vector.load %arg4[%c0_6, %c0_7] : memref<1x20xf32, #tpu.memory_space<vmem>>, vector<1x20xf32>
    %12 = vector.broadcast %11 : vector<1x20xf32> to vector<128x20xf32>
    %13 = arith.mulf %10, %12 : vector<128x20xf32>
    %cst_8 = arith.constant dense<0.000000e+00> : vector<128xf32>
    %14 = vector.multi_reduction <add>, %13, %cst_8 [1] : vector<128x20xf32> to vector<128xf32>
    %c0_9 = arith.constant 0 : index
    %c0_10 = arith.constant 0 : index
    %15 = memref.load %arg5[%c0_9, %c0_10] : memref<1x1xf32, #tpu.memory_space<smem>>
    %16 = vector.broadcast %15 : f32 to vector<128xf32>
    %17 = arith.addf %14, %16 : vector<128xf32>
    %18 = arith.negf %17 : vector<128xf32>
    %19 = math.exp %18 : vector<128xf32>
    %cst_11 = arith.constant 1.000000e+00 : f32
    %20 = vector.broadcast %cst_11 : f32 to vector<128xf32>
    %21 = arith.addf %20, %19 : vector<128xf32>
    %22 = arith.divf %20, %21 : vector<128xf32>
    %23 = vector.shape_cast %22 : vector<128xf32> to vector<1x128xf32>
    %c0_12 = arith.constant 0 : index
    %c0_13 = arith.constant 0 : index
    %24 = vector.load %arg6[%c0_12, %c0_13] : memref<1x128xf32, #tpu.memory_space<vmem>>, vector<1x128xf32>
    tpu.vector_store %arg6[%c0_12, %c0_13], %23 {strides = array<i32>} : memref<1x128xf32, #tpu.memory_space<vmem>>, vector<1x128xf32>,
    return
  }
  func.func @transform_0(%arg0: i32) -> (i32, i32) {
    %c0_i32 = arith.constant 0 : i32
    %c0_i32_0 = arith.constant 0 : i32
    return %arg0, %c0_i32 : i32, i32
  }
  func.func @transform_1(%arg0: i32) -> (i32, i32) {
    %c0_i32 = arith.constant 0 : i32
    %c0_i32_0 = arith.constant 0 : i32
    %c0_i32_1 = arith.constant 0 : i32
    return %c0_i32, %c0_i32_0 : i32, i32
  }
  func.func @transform_2(%arg0: i32) -> (i32, i32) {
    %c0_i32 = arith.constant 0 : i32
    %c0_i32_0 = arith.constant 0 : i32
    %c0_i32_1 = arith.constant 0 : i32
    return %c0_i32, %c0_i32_0 : i32, i32
  }
  func.func @transform_3(%arg0: i32) -> (i32, i32) {
    %c0_i32 = arith.constant 0 : i32
    %c0_i32_0 = arith.constant 0 : i32
    %c0_i32_1 = arith.constant 0 : i32
    return %c0_i32, %c0_i32_0 : i32, i32
  }
  func.func @transform_4(%arg0: i32) -> (i32, i32) {
    %c0_i32 = arith.constant 0 : i32
    %c0_i32_0 = arith.constant 0 : i32
    %c0_i32_1 = arith.constant 0 : i32
    return %c0_i32, %c0_i32_0 : i32, i32
  }
  func.func @transform_5(%arg0: i32) -> (i32, i32) {
    %c0_i32 = arith.constant 0 : i32
    %c0_i32_0 = arith.constant 0 : i32
    return %arg0, %c0_i32 : i32, i32
  }
}

</mosaic_0001>

<llo_original>
// kernel: tpu_custom_call.1
$region0: #{tpu_custom_call.1}
  #allocation0 [shape = 'u32[]', space=smem, size = 0x4, offset = 0x4, fixed_abs, tag = 'smem constant byte address 0x4 - core index']
  #allocation1 [shape = 'u32[144,128]{1,0:T(1,128)}', space=vmem, size = 0x12000, scoped, tag = 'internal scratch']
  #allocation2 [shape = 'f32[1,1]{1,0:T(1,128)S(6)}', space=smem, size = 0x200, scoped, tag = 'scoped memory for tpu_custom_call.1']
  %s0 = inlined_call_operand.vmem [shape: f32[128,32], index: 0, kind: input, shape index: {}]
  %s1 = inlined_call_operand.vmem [shape: f32[32,20], index: 1, kind: input, shape index: {}]
  %s2 = inlined_call_operand.vmem [shape: f32[1,20], index: 2, kind: input, shape index: {}]
  %s3 = inlined_call_operand.vmem [shape: f32[1,20], index: 3, kind: input, shape index: {}]
  %s4 = inlined_call_operand.<no memory space> [shape: f32[1,1], index: 4, kind: input, shape index: {}]
  %s5 = inlined_call_operand.hbm [shape: f32[1,128], index: 5, kind: output, shape index: {}]
  %s6 = sld [smem:[#allocation0]]
  $region30: #{tpu_custom_call.1} parent=0
    _
  %s8 = ssub.s32 1, %s6
  %s9 = scalar_select 0, %s8, %s6
  %10 = sst [smem:[#allocation2]] %s4
  $region1: #{tpu_custom_call.1} parent=0
    #allocation3 [shape = 'u8[512]{0}', space=vmem, size = 0x400, scoped, tag = 'output window, operand 0, single buffered']
    #allocation4 [shape = 's32[1]{0}', space=sflag, size = 0x4, scoped, tag = 'scoped memory for tpu_custom_call.1']
    %11 = vsyncpa [#allocation4], 0
    // Predicated region
    $region2: #{tpu_custom_call.1} parent=1 // pred_check
      _
    $region3: #{tpu_custom_call.1} parent=1 // pred_check_branch
      %13 = sbr.rel (0) target = $region5
    $region4: #{tpu_custom_call.1} parent=1 // pred_region
      _
    $region5: #{tpu_custom_call.1} parent=1 // pred_fallthru
      _
    // Predicated region
    $region6: #{tpu_custom_call.1} parent=1 // pred_check
      _
    $region7: #{tpu_custom_call.1} parent=1 // pred_check_branch
      %15 = sbr.rel (0) target = $region9
    $region8: #{tpu_custom_call.1} parent=1 // pred_region
      _
    $region9: #{tpu_custom_call.1} parent=1 // pred_fallthru
      _
    // Predicated region
    $region10: #{tpu_custom_call.1} parent=1 // pred_check
      _
    $region11: #{tpu_custom_call.1} parent=1 // pred_check_branch
      %17 = sbr.rel (0) target = $region13
    $region12: #{tpu_custom_call.1} parent=1 // pred_region
      _
    $region13: #{tpu_custom_call.1} parent=1 // pred_fallthru
      _
    // Predicated region
    $region14: #{tpu_custom_call.1} parent=1 // pred_check
      _
    $region15: #{tpu_custom_call.1} parent=1 // pred_check_branch
      %19 = sbr.rel (0) target = $region17
    $region16: #{tpu_custom_call.1} parent=1 // pred_region
      _
    $region17: #{tpu_custom_call.1} parent=1 // pred_fallthru
      _
    // Predicated region
    $region18: #{tpu_custom_call.1} parent=1 // pred_check
      _
    $region19: #{tpu_custom_call.1} parent=1 // pred_check_branch
      %21 = sbr.rel (0) target = $region21
    $region20: #{tpu_custom_call.1} parent=1 // pred_region
      _
    $region21: #{tpu_custom_call.1} parent=1 // pred_fallthru
      _
    %v22 = vld [vmem:[%s0] sm:$0xff]
    %v23 = vld [vmem:[%s0 + $0x8] sm:$0xff]
    %v24 = vld [vmem:[%s0 + $0x10] sm:$0xff]
    %v25 = vld [vmem:[%s0 + $0x18] sm:$0xff]
    %v26 = vld [vmem:[%s0 + $0x20] sm:$0xff]
    %v27 = vld [vmem:[%s0 + $0x28] sm:$0xff]
    %v28 = vld [vmem:[%s0 + $0x30] sm:$0xff]
    %v29 = vld [vmem:[%s0 + $0x38] sm:$0xff]
    %v30 = vld [vmem:[%s0 + $0x40] sm:$0xff]
    %v31 = vld [vmem:[%s0 + $0x48] sm:$0xff]
    %v32 = vld [vmem:[%s0 + $0x50] sm:$0xff]
    %v33 = vld [vmem:[%s0 + $0x58] sm:$0xff]
    %v34 = vld [vmem:[%s0 + $0x60] sm:$0xff]
    %v35 = vld [vmem:[%s0 + $0x68] sm:$0xff]
    %v36 = vld [vmem:[%s0 + $0x70] sm:$0xff]
    %v37 = vld [vmem:[%s0 + $0x78] sm:$0xff]
    %v38 = vld [vmem:[%s1] sm:$0xff]
    %v39 = vld [vmem:[%s1 + $0x8] sm:$0xff]
    %v40 = vld [vmem:[%s1 + $0x10] sm:$0xff]
    %v41 = vld [vmem:[%s1 + $0x18] sm:$0xff]
    %v42 = vld [vmem:[%s2] sm:$0x1]
    %v44 = vlaneseq
    %v45 = vshrl.u32 %v44, 7
    %v46 = vsub.s32 0, %v45
    %v47 = vrot.slane %v42, %v46
    %vm49 = vcmask 261120
    %v51 = vsel %vm49, %v22, 0
    %v54 = vsel %vm49, %v23, 0
    %v57 = vsel %vm49, %v24, 0
    %v60 = vsel %vm49, %v25, 0
    %v63 = vsel %vm49, %v26, 0
    %v66 = vsel %vm49, %v27, 0
    %v69 = vsel %vm49, %v28, 0
    %v72 = vsel %vm49, %v29, 0
    %v75 = vsel %vm49, %v30, 0
    %v78 = vsel %vm49, %v31, 0
    %v81 = vsel %vm49, %v32, 0
    %v84 = vsel %vm49, %v33, 0
    %v87 = vsel %vm49, %v34, 0
    %v90 = vsel %vm49, %v35, 0
    %v93 = vsel %vm49, %v36, 0
    %v96 = vsel %vm49, %v37, 0
    %98 = vmatprep.subr.mxu0 0.0
    %99 = vmatpush1.msra.mxu0 %v38
    %100 = vmatprep.subr.mxu0 0.0
    %101 = vmatpush1.msra.mxu0 %v39
    %102 = vmatprep.subr.mxu0 0.0
    %103 = vmatpush1.msra.mxu0 %v40
    %104 = vmatprep.subr.mxu0 0.0
    %105 = vmatpush1.msra.mxu0 %v41
    %106 = vmatprep.subr.mxu0 0.0
    %107 = vmatpush1.msra.mxu0 0.0
    %108 = vmatprep.subr.mxu0 0.0
    %109 = vmatpush1.msra.mxu0 0.0
    %110 = vmatprep.subr.mxu0 0.0
    %111 = vmatpush1.msra.mxu0 0.0
    %112 = vmatprep.subr.mxu0 0.0
    %113 = vmatpush1.msra.mxu0 0.0
    %114 = vmatprep.subr.mxu0 0.0
    %115 = vmatpush1.msra.mxu0 0.0
    %116 = vmatprep.subr.mxu0 0.0
    %117 = vmatpush1.msra.mxu0 0.0
    %118 = vmatprep.subr.mxu0 0.0
    %119 = vmatpush1.msra.mxu0 0.0
    %120 = vmatprep.subr.mxu0 0.0
    %121 = vmatpush1.msra.mxu0 0.0
    %122 = vmatprep.subr.mxu0 0.0
    %123 = vmatpush1.msra.mxu0 0.0
    %124 = vmatprep.subr.mxu0 0.0
    %125 = vmatpush1.msra.mxu0 0.0
    %126 = vmatprep.subr.mxu0 0.0
    %127 = vmatpush1.msra.mxu0 0.0
    %128 = vmatprep.subr.mxu0 0.0
    %129 = vmatpush1.msra.mxu0 0.0
    %130 = vmatprep.subr.mxu0 0.0
    %131 = vmatpush1.msra.mxu0 0.0
    %132 = vmatprep.subr.mxu0 0.0
    %133 = vmatpush1.msra.mxu0 0.0
    %134 = vmatprep.subr.mxu0 0.0
    %135 = vmatpush1.msra.mxu0 0.0
    %136 = vmatprep.subr.mxu0 0.0
    %137 = vmatpush1.msra.mxu0 0.0
    %138 = vmatprep.subr.mxu0 0.0
    %139 = vmatpush1.msra.mxu0 0.0
    %140 = vmatprep.subr.mxu0 0.0
    %141 = vmatpush1.msra.mxu0 0.0
    %142 = vmatprep.subr.mxu0 0.0
    %143 = vmatpush1.msra.mxu0 0.0
    %144 = vmatprep.subr.mxu0 0.0
    %145 = vmatpush1.msra.mxu0 0.0
    %146 = vmatprep.subr.mxu0 0.0
    %147 = vmatpush1.msra.mxu0 0.0
    %148 = vmatprep.subr.mxu0 0.0
    %149 = vmatpush1.msra.mxu0 0.0
    %150 = vmatprep.subr.mxu0 0.0
    %151 = vmatpush1.msra.mxu0 0.0
    %152 = vmatprep.subr.mxu0 0.0
    %153 = vmatpush1.msra.mxu0 0.0
    %154 = vmatprep.subr.mxu0 0.0
    %155 = vmatpush1.msra.mxu0 0.0
    %156 = vmatprep.subr.mxu0 0.0
    %157 = vmatpush1.msra.mxu0 0.0
    %158 = vmatprep.subr.mxu0 0.0
    %159 = vmatpush1.msra.mxu0 0.0
    %160 = vmatprep.subr.mxu0 0.0
    %161 = vmatpush1.msra.mxu0 0.0
    %162 = vmatprep.mubr.f32.mxu0 0.0
    %163 = vmatmul.mubr.f32.gmra.mrb[0].mxu0 %v51
    %v164 = vpop.f32.mrb[0].mxu0
    %v165 = vadd.f32 %v47, %v164
    %v166 = vpop.f32.mrb[0].mxu0
    %167 = vmatprep.mubr.f32.mxu0 0.0
    %168 = vmatmul.mubr.f32.gmra.mrb[0].mxu0 %v54
    %v169 = vpop.f32.mrb[0].mxu0
    %v170 = vadd.f32 %v47, %v169
    %v171 = vpop.f32.mrb[0].mxu0
    %172 = vmatprep.mubr.f32.mxu0 0.0
    %173 = vmatmul.mubr.f32.gmra.mrb[0].mxu0 %v57
    %v174 = vpop.f32.mrb[0].mxu0
    %v175 = vadd.f32 %v47, %v174
    %v176 = vpop.f32.mrb[0].mxu0
    %177 = vmatprep.mubr.f32.mxu0 0.0
    %178 = vmatmul.mubr.f32.gmra.mrb[0].mxu0 %v60
    %v179 = vpop.f32.mrb[0].mxu0
    %v180 = vadd.f32 %v47, %v179
    %v181 = vpop.f32.mrb[0].mxu0
    %182 = vmatprep.mubr.f32.mxu0 0.0
    %183 = vmatmul.mubr.f32.gmra.mrb[0].mxu0 %v63
    %v184 = vpop.f32.mrb[0].mxu0
    %v185 = vadd.f32 %v47, %v184
    %v186 = vpop.f32.mrb[0].mxu0
    %187 = vmatprep.mubr.f32.mxu0 0.0
    %188 = vmatmul.mubr.f32.gmra.mrb[0].mxu0 %v66
    %v189 = vpop.f32.mrb[0].mxu0
    %v190 = vadd.f32 %v47, %v189
    %v191 = vpop.f32.mrb[0].mxu0
    %192 = vmatprep.mubr.f32.mxu0 0.0
    %193 = vmatmul.mubr.f32.gmra.mrb[0].mxu0 %v69
    %v194 = vpop.f32.mrb[0].mxu0
    %v195 = vadd.f32 %v47, %v194
    %v196 = vpop.f32.mrb[0].mxu0
    %197 = vmatprep.mubr.f32.mxu0 0.0
    %198 = vmatmul.mubr.f32.gmra.mrb[0].mxu0 %v72
    %v199 = vpop.f32.mrb[0].mxu0
    %v200 = vadd.f32 %v47, %v199
    %v201 = vpop.f32.mrb[0].mxu0
    %202 = vmatprep.mubr.f32.mxu0 0.0
    %203 = vmatmul.mubr.f32.gmra.mrb[0].mxu0 %v75
    %v204 = vpop.f32.mrb[0].mxu0
    %v205 = vadd.f32 %v47, %v204
    %v206 = vpop.f32.mrb[0].mxu0
    %207 = vmatprep.mubr.f32.mxu0 0.0
    %208 = vmatmul.mubr.f32.gmra.mrb[0].mxu0 %v78
    %v209 = vpop.f32.mrb[0].mxu0
    %v210 = vadd.f32 %v47, %v209
    %v211 = vpop.f32.mrb[0].mxu0
    %212 = vmatprep.mubr.f32.mxu0 0.0
    %213 = vmatmul.mubr.f32.gmra.mrb[0].mxu0 %v81
    %v214 = vpop.f32.mrb[0].mxu0
    %v215 = vadd.f32 %v47, %v214
    %v216 = vpop.f32.mrb[0].mxu0
    %217 = vmatprep.mubr.f32.mxu0 0.0
    %218 = vmatmul.mubr.f32.gmra.mrb[0].mxu0 %v84
    %v219 = vpop.f32.mrb[0].mxu0
    %v220 = vadd.f32 %v47, %v219
    %v221 = vpop.f32.mrb[0].mxu0
    %222 = vmatprep.mubr.f32.mxu0 0.0
    %223 = vmatmul.mubr.f32.gmra.mrb[0].mxu0 %v87
    %v224 = vpop.f32.mrb[0].mxu0
    %v225 = vadd.f32 %v47, %v224
    %v226 = vpop.f32.mrb[0].mxu0
    %227 = vmatprep.mubr.f32.mxu0 0.0
    %228 = vmatmul.mubr.f32.gmra.mrb[0].mxu0 %v90
    %v229 = vpop.f32.mrb[0].mxu0
    %v230 = vadd.f32 %v47, %v229
    %v231 = vpop.f32.mrb[0].mxu0
    %232 = vmatprep.mubr.f32.mxu0 0.0
    %233 = vmatmul.mubr.f32.gmra.mrb[0].mxu0 %v93
    %v234 = vpop.f32.mrb[0].mxu0
    %v235 = vadd.f32 %v47, %v234
    %v236 = vpop.f32.mrb[0].mxu0
    %237 = vmatprep.mubr.f32.mxu0 0.0
    %238 = vmatmul.mubr.f32.gmra.mrb[0].mxu0 %v96
    %v239 = vpop.f32.mrb[0].mxu0
    %v240 = vadd.f32 %v47, %v239
    %v241 = vpop.f32.mrb[0].mxu0
    %242 = vdwg.mxu0
    %v243 = vxor.u32 %v165, 2147483648
    %v244 = vxor.u32 %v170, 2147483648
    %v245 = vxor.u32 %v175, 2147483648
    %v246 = vxor.u32 %v180, 2147483648
    %v247 = vxor.u32 %v185, 2147483648
    %v248 = vxor.u32 %v190, 2147483648
    %v249 = vxor.u32 %v195, 2147483648
    %v250 = vxor.u32 %v200, 2147483648
    %v251 = vxor.u32 %v205, 2147483648
    %v252 = vxor.u32 %v210, 2147483648
    %v253 = vxor.u32 %v215, 2147483648
    %v254 = vxor.u32 %v220, 2147483648
    %v255 = vxor.u32 %v225, 2147483648
    %v256 = vxor.u32 %v230, 2147483648
    %v257 = vxor.u32 %v235, 2147483648
    %v258 = vxor.u32 %v240, 2147483648
    %v259 = vmul.f32 %v243, 1.442695
    %v260 = vpow.pop %v259
    %v261 = vmul.f32 %v244, 1.442695
    %v262 = vpow.pop %v261
    %v263 = vmul.f32 %v245, 1.442695
    %v264 = vpow.pop %v263
    %v265 = vmul.f32 %v246, 1.442695
    %v266 = vpow.pop %v265
    %v267 = vmul.f32 %v247, 1.442695
    %v268 = vpow.pop %v267
    %v269 = vmul.f32 %v248, 1.442695
    %v270 = vpow.pop %v269
    %v271 = vmul.f32 %v249, 1.442695
    %v272 = vpow.pop %v271
    %v273 = vmul.f32 %v250, 1.442695
    %v274 = vpow.pop %v273
    %v275 = vmul.f32 %v251, 1.442695
    %v276 = vpow.pop %v275
    %v277 = vmul.f32 %v252, 1.442695
    %v278 = vpow.pop %v277
    %v279 = vmul.f32 %v253, 1.442695
    %v280 = vpow.pop %v279
    %v281 = vmul.f32 %v254, 1.442695
    %v282 = vpow.pop %v281
    %v283 = vmul.f32 %v255, 1.442695
    %v284 = vpow.pop %v283
    %v285 = vmul.f32 %v256, 1.442695
    %v286 = vpow.pop %v285
    %v287 = vmul.f32 %v257, 1.442695
    %v288 = vpow.pop %v287
    %v289 = vmul.f32 %v258, 1.442695
    %v290 = vpow.pop %v289
    %v291 = vadd.f32 %v260, 1.0
    %v292 = vadd.f32 %v262, 1.0
    %v293 = vadd.f32 %v264, 1.0
    %v294 = vadd.f32 %v266, 1.0
    %v295 = vadd.f32 %v268, 1.0
    %v296 = vadd.f32 %v270, 1.0
    %v297 = vadd.f32 %v272, 1.0
    %v298 = vadd.f32 %v274, 1.0
    %v299 = vadd.f32 %v276, 1.0
    %v300 = vadd.f32 %v278, 1.0
    %v301 = vadd.f32 %v280, 1.0
    %v302 = vadd.f32 %v282, 1.0
    %v303 = vadd.f32 %v284, 1.0
    %v304 = vadd.f32 %v286, 1.0
    %v305 = vadd.f32 %v288, 1.0
    %v306 = vadd.f32 %v290, 1.0
    %v307 = vrcp.pop %v291
    %v308 = vmul.f32 1.0, %v307
    %v309 = vrcp.pop %v292
    %v310 = vmul.f32 1.0, %v309
    %v311 = vrcp.pop %v293
    %v312 = vmul.f32 1.0, %v311
    %v313 = vrcp.pop %v294
    %v314 = vmul.f32 1.0, %v313
    %v315 = vrcp.pop %v295
    %v316 = vmul.f32 1.0, %v315
    %v317 = vrcp.pop %v296
    %v318 = vmul.f32 1.0, %v317
    %v319 = vrcp.pop %v297
    %v320 = vmul.f32 1.0, %v319
    %v321 = vrcp.pop %v298
    %v322 = vmul.f32 1.0, %v321
    %v323 = vrcp.pop %v299
    %v324 = vmul.f32 1.0, %v323
    %v325 = vrcp.pop %v300
    %v326 = vmul.f32 1.0, %v325
    %v327 = vrcp.pop %v301
    %v328 = vmul.f32 1.0, %v327
    %v329 = vrcp.pop %v302
    %v330 = vmul.f32 1.0, %v329
    %v331 = vrcp.pop %v303
    %v332 = vmul.f32 1.0, %v331
    %v333 = vrcp.pop %v304
    %v334 = vmul.f32 1.0, %v333
    %v335 = vrcp.pop %v305
    %v336 = vmul.f32 1.0, %v335
    %v337 = vrcp.pop %v306
    %v338 = vmul.f32 1.0, %v337
    %v339 = vld [vmem:[%s3] sm:$0x1]
    %v341 = vlaneseq
    %v342 = vshrl.u32 %v341, 7
    %v343 = vsub.s32 0, %v342
    %v344 = vrot.slane %v339, %v343
    %v346 = vmul.f32 %v308, %v344
    %v347 = vmul.f32 %v310, %v344
    %v348 = vmul.f32 %v312, %v344
    %v349 = vmul.f32 %v314, %v344
    %v350 = vmul.f32 %v316, %v344
    %v351 = vmul.f32 %v318, %v344
    %v352 = vmul.f32 %v320, %v344
    %v353 = vmul.f32 %v322, %v344
    %v354 = vmul.f32 %v324, %v344
    %v355 = vmul.f32 %v326, %v344
    %v356 = vmul.f32 %v328, %v344
    %v357 = vmul.f32 %v330, %v344
    %v358 = vmul.f32 %v332, %v344
    %v359 = vmul.f32 %v334, %v344
    %v360 = vmul.f32 %v336, %v344
    %v361 = vmul.f32 %v338, %v344
    %vm362 = vcmask 162816
    %v363 = vsel %vm362, %v346, 0.0
    %364 = vadd.xlane.f32.xlu0 %v363
    %v365 = vpop.xlane.xlu0 %364
    %v366 = vsel %vm362, %v347, 0.0
    %367 = vadd.xlane.f32.xlu0 %v366
    %v368 = vpop.xlane.xlu0 %367
    %v369 = vsel %vm362, %v348, 0.0
    %370 = vadd.xlane.f32.xlu0 %v369
    %v371 = vpop.xlane.xlu0 %370
    %v372 = vsel %vm362, %v349, 0.0
    %373 = vadd.xlane.f32.xlu0 %v372
    %v374 = vpop.xlane.xlu0 %373
    %v375 = vsel %vm362, %v350, 0.0
    %376 = vadd.xlane.f32.xlu0 %v375
    %v377 = vpop.xlane.xlu0 %376
    %v378 = vsel %vm362, %v351, 0.0
    %379 = vadd.xlane.f32.xlu0 %v378
    %v380 = vpop.xlane.xlu0 %379
    %v381 = vsel %vm362, %v352, 0.0
    %382 = vadd.xlane.f32.xlu0 %v381
    %v383 = vpop.xlane.xlu0 %382
    %v384 = vsel %vm362, %v353, 0.0
    %385 = vadd.xlane.f32.xlu0 %v384
    %v386 = vpop.xlane.xlu0 %385
    %v387 = vsel %vm362, %v354, 0.0
    %388 = vadd.xlane.f32.xlu0 %v387
    %v389 = vpop.xlane.xlu0 %388
    %v390 = vsel %vm362, %v355, 0.0
    %391 = vadd.xlane.f32.xlu0 %v390
    %v392 = vpop.xlane.xlu0 %391
    %v393 = vsel %vm362, %v356, 0.0
    %394 = vadd.xlane.f32.xlu0 %v393
    %v395 = vpop.xlane.xlu0 %394
    %v396 = vsel %vm362, %v357, 0.0
    %397 = vadd.xlane.f32.xlu0 %v396
    %v398 = vpop.xlane.xlu0 %397
    %v399 = vsel %vm362, %v358, 0.0
    %400 = vadd.xlane.f32.xlu0 %v399
    %v401 = vpop.xlane.xlu0 %400
    %v402 = vsel %vm362, %v359, 0.0
    %403 = vadd.xlane.f32.xlu0 %v402
    %v404 = vpop.xlane.xlu0 %403
    %v405 = vsel %vm362, %v360, 0.0
    %406 = vadd.xlane.f32.xlu0 %v405
    %v407 = vpop.xlane.xlu0 %406
    %v408 = vsel %vm362, %v361, 0.0
    %409 = vadd.xlane.f32.xlu0 %v408
    %v410 = vpop.xlane.xlu0 %409
    %s411 = sld [smem:[#allocation2]]
    %v412 = vstv %s411
    %v413 = vadd.f32 %v365, %v412
    %v414 = vadd.f32 %v368, %v412
    %v415 = vadd.f32 %v371, %v412
    %v416 = vadd.f32 %v374, %v412
    %v417 = vadd.f32 %v377, %v412
    %v418 = vadd.f32 %v380, %v412
    %v419 = vadd.f32 %v383, %v412
    %v420 = vadd.f32 %v386, %v412
    %v421 = vadd.f32 %v389, %v412
    %v422 = vadd.f32 %v392, %v412
    %v423 = vadd.f32 %v395, %v412
    %v424 = vadd.f32 %v398, %v412
    %v425 = vadd.f32 %v401, %v412
    %v426 = vadd.f32 %v404, %v412
    %v427 = vadd.f32 %v407, %v412
    %v428 = vadd.f32 %v410, %v412
    %v429 = vxor.u32 %v413, 2147483648
    %v430 = vxor.u32 %v414, 2147483648
    %v431 = vxor.u32 %v415, 2147483648
    %v432 = vxor.u32 %v416, 2147483648
    %v433 = vxor.u32 %v417, 2147483648
    %v434 = vxor.u32 %v418, 2147483648
    %v435 = vxor.u32 %v419, 2147483648
    %v436 = vxor.u32 %v420, 2147483648
    %v437 = vxor.u32 %v421, 2147483648
    %v438 = vxor.u32 %v422, 2147483648
    %v439 = vxor.u32 %v423, 2147483648
    %v440 = vxor.u32 %v424, 2147483648
    %v441 = vxor.u32 %v425, 2147483648
    %v442 = vxor.u32 %v426, 2147483648
    %v443 = vxor.u32 %v427, 2147483648
    %v444 = vxor.u32 %v428, 2147483648
    %v445 = vmul.f32 %v429, 1.442695
    %v446 = vpow.pop %v445
    %v447 = vmul.f32 %v430, 1.442695
    %v448 = vpow.pop %v447
    %v449 = vmul.f32 %v431, 1.442695
    %v450 = vpow.pop %v449
    %v451 = vmul.f32 %v432, 1.442695
    %v452 = vpow.pop %v451
    %v453 = vmul.f32 %v433, 1.442695
    %v454 = vpow.pop %v453
    %v455 = vmul.f32 %v434, 1.442695
    %v456 = vpow.pop %v455
    %v457 = vmul.f32 %v435, 1.442695
    %v458 = vpow.pop %v457
    %v459 = vmul.f32 %v436, 1.442695
    %v460 = vpow.pop %v459
    %v461 = vmul.f32 %v437, 1.442695
    %v462 = vpow.pop %v461
    %v463 = vmul.f32 %v438, 1.442695
    %v464 = vpow.pop %v463
    %v465 = vmul.f32 %v439, 1.442695
    %v466 = vpow.pop %v465
    %v467 = vmul.f32 %v440, 1.442695
    %v468 = vpow.pop %v467
    %v469 = vmul.f32 %v441, 1.442695
    %v470 = vpow.pop %v469
    %v471 = vmul.f32 %v442, 1.442695
    %v472 = vpow.pop %v471
    %v473 = vmul.f32 %v443, 1.442695
    %v474 = vpow.pop %v473
    %v475 = vmul.f32 %v444, 1.442695
    %v476 = vpow.pop %v475
    %v477 = vadd.f32 %v446, 1.0
    %v478 = vadd.f32 %v448, 1.0
    %v479 = vadd.f32 %v450, 1.0
    %v480 = vadd.f32 %v452, 1.0
    %v481 = vadd.f32 %v454, 1.0
    %v482 = vadd.f32 %v456, 1.0
    %v483 = vadd.f32 %v458, 1.0
    %v484 = vadd.f32 %v460, 1.0
    %v485 = vadd.f32 %v462, 1.0
    %v486 = vadd.f32 %v464, 1.0
    %v487 = vadd.f32 %v466, 1.0
    %v488 = vadd.f32 %v468, 1.0
    %v489 = vadd.f32 %v470, 1.0
    %v490 = vadd.f32 %v472, 1.0
    %v491 = vadd.f32 %v474, 1.0
    %v492 = vadd.f32 %v476, 1.0
    %v493 = vrcp.pop %v477
    %v494 = vmul.f32 1.0, %v493
    %v495 = vrcp.pop %v478
    %v496 = vmul.f32 1.0, %v495
    %v497 = vrcp.pop %v479
    %v498 = vmul.f32 1.0, %v497
    %v499 = vrcp.pop %v480
    %v500 = vmul.f32 1.0, %v499
    %v501 = vrcp.pop %v481
    %v502 = vmul.f32 1.0, %v501
    %v503 = vrcp.pop %v482
    %v504 = vmul.f32 1.0, %v503
    %v505 = vrcp.pop %v483
    %v506 = vmul.f32 1.0, %v505
    %v507 = vrcp.pop %v484
    %v508 = vmul.f32 1.0, %v507
    %v509 = vrcp.pop %v485
    %v510 = vmul.f32 1.0, %v509
    %v511 = vrcp.pop %v486
    %v512 = vmul.f32 1.0, %v511
    %v513 = vrcp.pop %v487
    %v514 = vmul.f32 1.0, %v513
    %v515 = vrcp.pop %v488
    %v516 = vmul.f32 1.0, %v515
    %v517 = vrcp.pop %v489
    %v518 = vmul.f32 1.0, %v517
    %v519 = vrcp.pop %v490
    %v520 = vmul.f32 1.0, %v519
    %v521 = vrcp.pop %v491
    %v522 = vmul.f32 1.0, %v521
    %v523 = vrcp.pop %v492
    %v524 = vmul.f32 1.0, %v523
    %v541 = vlaneseq
    %v542 = vand.u32 %v541, 127
    %v543 = vlaneseq
    %v544 = vshrl.u32 %v543, 7
    %v545 = vsub.s32 %v542, %v544
    %v546 = vrot.slane %v494, %v545
    %v547 = vadd.s32 %v542, 4294967288
    %v548 = vlaneseq
    %v549 = vshrl.u32 %v548, 7
    %v550 = vsub.s32 %v547, %v549
    %v551 = vrot.slane %v496, %v550
    %vm552 = vcmask 130112
    %v553 = vsel %vm552, %v551, %v546
    %v554 = vadd.s32 %v542, 4294967280
    %v555 = vlaneseq
    %v556 = vshrl.u32 %v555, 7
    %v557 = vsub.s32 %v554, %v556
    %v558 = vrot.slane %v498, %v557
    %vm559 = vcmask 195712
    %v560 = vsel %vm559, %v558, %v553
    %v561 = vadd.s32 %v542, 4294967272
    %v562 = vlaneseq
    %v563 = vshrl.u32 %v562, 7
    %v564 = vsub.s32 %v561, %v563
    %v565 = vrot.slane %v500, %v564
    %vm566 = vcmask 261312
    %v567 = vsel %vm566, %v565, %v560
    %v568 = vadd.s32 %v542, 4294967264
    %v569 = vlaneseq
    %v570 = vshrl.u32 %v569, 7
    %v571 = vsub.s32 %v568, %v570
    %v572 = vrot.slane %v502, %v571
    %vm573 = vcmask 326912
    %v574 = vsel %vm573, %v572, %v567
    %v575 = vadd.s32 %v542, 4294967256
    %v576 = vlaneseq
    %v577 = vshrl.u32 %v576, 7
    %v578 = vsub.s32 %v575, %v577
    %v579 = vrot.slane %v504, %v578
    %vm580 = vcmask 392512
    %v581 = vsel %vm580, %v579, %v574
    %v582 = vadd.s32 %v542, 4294967248
    %v583 = vlaneseq
    %v584 = vshrl.u32 %v583, 7
    %v585 = vsub.s32 %v582, %v584
    %v586 = vrot.slane %v506, %v585
    %vm587 = vcmask 458112
    %v588 = vsel %vm587, %v586, %v581
    %v589 = vadd.s32 %v542, 4294967240
    %v590 = vlaneseq
    %v591 = vshrl.u32 %v590, 7
    %v592 = vsub.s32 %v589, %v591
    %v593 = vrot.slane %v508, %v592
    %vm594 = vcmask 523712
    %v595 = vsel %vm594, %v593, %v588
    %v596 = vadd.s32 %v542, 4294967232
    %v597 = vlaneseq
    %v598 = vshrl.u32 %v597, 7
    %v599 = vsub.s32 %v596, %v598
    %v600 = vrot.slane %v510, %v599
    %vm601 = vcmask 589312
    %v602 = vsel %vm601, %v600, %v595
    %v603 = vadd.s32 %v542, 4294967224
    %v604 = vlaneseq
    %v605 = vshrl.u32 %v604, 7
    %v606 = vsub.s32 %v603, %v605
    %v607 = vrot.slane %v512, %v606
    %vm608 = vcmask 654912
    %v609 = vsel %vm608, %v607, %v602
    %v610 = vadd.s32 %v542, 4294967216
    %v611 = vlaneseq
    %v612 = vshrl.u32 %v611, 7
    %v613 = vsub.s32 %v610, %v612
    %v614 = vrot.slane %v514, %v613
    %vm615 = vcmask 720512
    %v616 = vsel %vm615, %v614, %v609
    %v617 = vadd.s32 %v542, 4294967208
    %v618 = vlaneseq
    %v619 = vshrl.u32 %v618, 7
    %v620 = vsub.s32 %v617, %v619
    %v621 = vrot.slane %v516, %v620
    %vm622 = vcmask 786112
    %v623 = vsel %vm622, %v621, %v616
    %v624 = vadd.s32 %v542, 4294967200
    %v625 = vlaneseq
    %v626 = vshrl.u32 %v625, 7
    %v627 = vsub.s32 %v624, %v626
    %v628 = vrot.slane %v518, %v627
    %vm629 = vcmask 851712
    %v630 = vsel %vm629, %v628, %v623
    %v631 = vadd.s32 %v542, 4294967192
    %v632 = vlaneseq
    %v633 = vshrl.u32 %v632, 7
    %v634 = vsub.s32 %v631, %v633
    %v635 = vrot.slane %v520, %v634
    %vm636 = vcmask 917312
    %v637 = vsel %vm636, %v635, %v630
    %v638 = vadd.s32 %v542, 4294967184
    %v639 = vlaneseq
    %v640 = vshrl.u32 %v639, 7
    %v641 = vsub.s32 %v638, %v640
    %v642 = vrot.slane %v522, %v641
    %vm643 = vcmask 982912
    %v644 = vsel %vm643, %v642, %v637
    %v645 = vadd.s32 %v542, 4294967176
    %v646 = vlaneseq
    %v647 = vshrl.u32 %v646, 7
    %v648 = vsub.s32 %v645, %v647
    %v649 = vrot.slane %v524, %v648
    %vm650 = vcmask 1048512
    %v651 = vsel %vm650, %v649, %v644
    %653 = vst [vmem:[#allocation3] sm:$0x1] %v651
    // Predicated region
    $region22: #{tpu_custom_call.1} parent=1 // pred_check
      _
    $region23: #{tpu_custom_call.1} parent=1 // pred_check_branch
      %655 = sbr.rel (0) target = $region25
    $region24: #{tpu_custom_call.1} parent=1 // pred_region
      %s657 = ssub.s32 16, 16
      %658 = vsyncadd [#allocation4], %s657
      %s660 = sshll.u32 [#allocation3], 4
      %s661 = int_to_ptr.vmem [resolvable:$true] %s660
      %663 = dma.vmem_to_hbm [thread:$0]  %s661, 16, %s5, [#allocation4]
    $region25: #{tpu_custom_call.1} parent=1 // pred_fallthru
      _
    // Predicated region
    $region26: #{tpu_custom_call.1} parent=1 // pred_check
      _
    $region27: #{tpu_custom_call.1} parent=1 // pred_check_branch
      %665 = sbr.rel (0) target = $region29
    $region28: #{tpu_custom_call.1} parent=1 // pred_region
      %666 = dma.done [#allocation4], 16
    $region29: #{tpu_custom_call.1} parent=1 // pred_fallthru
      _
    %667 = vsyncpa [#allocation4], 1

</llo_original>
